<compile_context>
chip_gen: v5e
topology: v5e:2x2
jax: 0.10.0
libtpu: 0.0.40
codegen_flags: <defaults>
</compile_context>

<pallas_src>
import functools

import jax
import jax.numpy as jnp
from jax.experimental import pallas as pl
from jax.experimental.pallas import tpu as pltpu


def _llama_hidden_dim(dim, hidden_dim, multiple_of, ffn_dim_multiplier):
    hidden_dim = int(2 * hidden_dim / 3)
    if ffn_dim_multiplier is not None:
        hidden_dim = int(ffn_dim_multiplier * hidden_dim)
    hidden_dim = multiple_of * ((hidden_dim + multiple_of - 1) // multiple_of)
    return hidden_dim


def _round_up(x, m):
    return ((x + m - 1) // m) * m


# ------------------------------------------------------------------ kernels --

def _ffn_kernel_acc(x_ref, w1_ref, w3_ref, w2_ref, o_ref, acc_ref):
    """Non-f32 activation path (e.g. bf16): accumulate the hidden-axis
    reduction in a dedicated f32 VMEM scratch, downcast once at the end."""
    k = pl.program_id(1)

    @pl.when(k == 0)
    def _():
        acc_ref[...] = jnp.zeros_like(acc_ref)

    x = x_ref[...]
    h1 = jnp.dot(x, w1_ref[...], preferred_element_type=jnp.float32)
    h3 = jnp.dot(x, w3_ref[...], preferred_element_type=jnp.float32)
    g = (h1 * jax.nn.sigmoid(h1)) * h3          # f32; sigmoid runs on the EUP
    acc_ref[...] += jnp.dot(g.astype(x.dtype), w2_ref[...],
                            preferred_element_type=jnp.float32)

    @pl.when(k == pl.num_programs(1) - 1)
    def _():
        o_ref[...] = acc_ref[...].astype(o_ref.dtype)


def _ffn_kernel_f32out(x_ref, w1_ref, w3_ref, w2_ref, o_ref):
    """f32 output path: o_ref's block index is constant along the k axis so it
    stays resident in VMEM -- accumulate into it directly.  Saves tm*dim*4
    bytes of scratch plus the final copy (VMEM headroom, esp. on v7x)."""
    k = pl.program_id(1)

    @pl.when(k == 0)
    def _():
        o_ref[...] = jnp.zeros_like(o_ref)

    x = x_ref[...]
    h1 = jnp.dot(x, w1_ref[...], preferred_element_type=jnp.float32)
    h3 = jnp.dot(x, w3_ref[...], preferred_element_type=jnp.float32)
    g = (h1 * jax.nn.sigmoid(h1)) * h3
    o_ref[...] += jnp.dot(g, w2_ref[...], preferred_element_type=jnp.float32)


# -------------------------------------------------------- one-time weight prep

def prepare_ffn_weights(w1, w2, w3, *, tk=512):
    """One-time (model-init) weight prep.

    w1, w3: [dim, hidden]; w2: [hidden, dim]  (PyTorch Linear weights, transposed).
    Pads the hidden dim to a multiple of the hidden tile `tk` so the per-call
    path never pads or copies weights.  Zero padding is exact
    (silu(0)*0 == 0 and zero W2 rows contribute 0).
    Returns (w1p, w3p, w2p, tk).
    """
    hidden = w1.shape[1]
    tk = max(128, min(tk, _round_up(hidden, 128)))
    tk = (tk // 128) * 128
    hidden_pad = _round_up(hidden, tk)
    if hidden_pad != hidden:
        pad_h = hidden_pad - hidden
        w1 = jnp.pad(w1, ((0, 0), (0, pad_h)))
        w3 = jnp.pad(w3, ((0, 0), (0, pad_h)))
        w2 = jnp.pad(w2, ((0, pad_h), (0, 0)))
    return w1, w3, w2, tk


# ----------------------------------------------------------- tiling heuristics

@functools.lru_cache(maxsize=1)
def _chip_defaults():
    """(default_tm, usable_vmem_bytes) for the local TPU generation."""
    vmem_cap = 64 << 20
    kind = ""
    try:
        vmem_cap = int(getattr(pltpu.get_tpu_info(), "vmem_capacity_bytes",
                               vmem_cap))
    except Exception:
        pass
    try:
        kind = jax.devices()[0].device_kind.lower()
    except Exception:
        pass

    if ("v5 lite" in kind) or ("v5e" in kind) or ("v5lite" in kind):
        # v5e balance point ~240 flops/byte: tm=256 already at the roofline.
        return 256, max(vmem_cap - (16 << 20), 48 << 20)
    if vmem_cap <= (64 << 20):
        # v7x: 64 MiB VMEM/TC, ~311 flops/byte -> tm~512, leave ~8 MiB headroom.
        return 512, vmem_cap - (8 << 20)
    # v6e (128 MiB VMEM, ~717 flops/byte): big row tile to reach the MXU roofline.
    return 768, vmem_cap - (16 << 20)


def _vmem_bytes(tm, tk, dim, a_sz, w_sz, use_acc):
    est = (2 * tm * dim * a_sz          # x tile (double-buffered)
           + 2 * 2 * dim * tk * w_sz    # W1 + W3 tiles
           + 2 * tk * dim * w_sz        # W2 tile
           + 2 * tm * dim * a_sz        # output tile
           + 3 * tm * tk * 4)           # f32 h1 / h3 / g temporaries
    if use_acc:
        est += tm * dim * 4             # f32 accumulator scratch
    return est


# ------------------------------------------------------------------ wrapper --

@functools.partial(jax.jit, static_argnames=("tm", "tk", "vmem_limit"))
def _feed_forward_impl(x, w1p, w3p, w2p, *, tm, tk, vmem_limit):
    B, S, dim = x.shape
    hidden_pad = w1p.shape[1]
    nk = hidden_pad // tk
    M = B * S
    M_pad = pl.cdiv(M, tm) * tm
    n_row_tiles = M_pad // tm

    x2d = x.reshape(M, dim)
    if M_pad != M:
        # Zero row padding is exact: padded rows just produce (discarded) zeros.
        x2d = jnp.pad(x2d, ((0, M_pad - M), (0, 0)))

    use_acc = x.dtype != jnp.float32
    kernel = _ffn_kernel_acc if use_acc else _ffn_kernel_f32out
    scratch = [pltpu.VMEM((tm, dim), jnp.float32)] if use_acc else []

    a_sz = jnp.dtype(x.dtype).itemsize
    w_sz = jnp.dtype(w1p.dtype).itemsize
    cost = pl.CostEstimate(
        flops=6 * M_pad * dim * hidden_pad,            # three matmuls
        transcendentals=M_pad * hidden_pad,            # sigmoid
        bytes_accessed=(n_row_tiles * 3 * dim * hidden_pad * w_sz
                        + 2 * M_pad * dim * a_sz),     # weight restream + x + out
    )

    # NOTE: if profiling shows an exposed DMA bubble only at k==0 of each row
    # tile, add pipeline_mode=pl.Buffered(3) to the weight in_specs (costs one
    # extra weight tile of VMEM); it is not a substitute for a larger tm.
    out2d = pl.pallas_call(
        kernel,
        out_shape=jax.ShapeDtypeStruct((M_pad, dim), x.dtype),
        grid_spec=pltpu.PrefetchScalarGridSpec(
            num_scalar_prefetch=0,
            grid=(n_row_tiles, nk),
            in_specs=[
                pl.BlockSpec((tm, dim), lambda i, k: (i, 0)),   # activation rows
                pl.BlockSpec((dim, tk), lambda i, k: (0, k)),   # W1 hidden tile
                pl.BlockSpec((dim, tk), lambda i, k: (0, k)),   # W3 hidden tile
                pl.BlockSpec((tk, dim), lambda i, k: (k, 0)),   # W2 hidden tile
            ],
            out_specs=pl.BlockSpec((tm, dim), lambda i, k: (i, 0)),
            scratch_shapes=scratch,
        ),
        compiler_params=pltpu.CompilerParams(
            dimension_semantics=("parallel", "arbitrary"),   # rows across cores, k reduction
            vmem_limit_bytes=vmem_limit,
        ),
        cost_estimate=cost,
    )(x2d, w1p, w3p, w2p)

    if M_pad != M:
        out2d = out2d[:M]
    return out2d.reshape(B, S, dim)


def feed_forward(x, w1p, w3p, w2p, *, tk, tm=None):
    """SwiGLU FFN with pre-prepared weights (see prepare_ffn_weights).

    x: [B, S, dim]; w1p, w3p: [dim, hidden_pad]; w2p: [hidden_pad, dim].
    """
    B, S, dim = x.shape
    hidden_pad = w1p.shape[1]
    assert hidden_pad % tk == 0, "tk must match prepare_ffn_weights"
    assert w3p.shape == (dim, hidden_pad) and w2p.shape == (hidden_pad, dim)
    M = B * S

    tm_default, vmem_cap = _chip_defaults()
    if tm is None:
        tm = tm_default

    # Sublane / MXU-tile alignment: 16-row granules for bf16 packing, and
    # 128-row multiples for full MXU tile occupancy once the tile is large.
    sub = 16 if x.dtype == jnp.bfloat16 else 8
    tm = min(tm, _round_up(M, sub))
    tm = _round_up(tm, sub)
    if tm >= 128:
        tm = _round_up(tm, 128)

    a_sz = jnp.dtype(x.dtype).itemsize
    w_sz = jnp.dtype(w1p.dtype).itemsize
    use_acc = x.dtype != jnp.float32

    # Keep the double-buffered working set inside usable VMEM: shrink tm first,
    # then halve tk (halving preserves divisibility of the pre-padded hidden).
    while _vmem_bytes(tm, tk, dim, a_sz, w_sz, use_acc) > vmem_cap and tm > 256:
        tm = max(256, tm - 128)
    while _vmem_bytes(tm, tk, dim, a_sz, w_sz, use_acc) > vmem_cap and tk > 256:
        tk //= 2

    est = _vmem_bytes(tm, tk, dim, a_sz, w_sz, use_acc)
    vmem_limit = int(min(vmem_cap, max(32 << 20, int(est * 1.25))))

    return _feed_forward_impl(x, w1p, w3p, w2p, tm=tm, tk=tk,
                              vmem_limit=vmem_limit)


def feed_forward_ref(x, w1, w2, w3):
    h1 = jnp.einsum("bsd,dh->bsh", x, w1)
    h3 = jnp.einsum("bsd,dh->bsh", x, w3)
    return jnp.einsum("bsh,hd->bsd", jax.nn.silu(h1) * h3, w2)


if __name__ == "__main__":
    # Module config (small): dim=128, hidden_dim=4*dim, multiple_of=256 -> hidden=768
    dim = 128
    hidden = _llama_hidden_dim(dim=dim, hidden_dim=4 * dim * 2, multiple_of=256,
                               ffn_dim_multiplier=None)  # 2*1024/3=682 -> 768

    B, S = 2, 8
    key = jax.random.PRNGKey(0)
    kx, k1, k2, k3 = jax.random.split(key, 4)

    x = jax.random.normal(kx, (B, S, dim), dtype=jnp.float32)
    # PyTorch Linear weights are [out, in]; stored here pre-transposed [in, out].
    w1 = jax.random.normal(k1, (dim, hidden), dtype=jnp.float32) * 0.02
    w3 = jax.random.normal(k3, (dim, hidden), dtype=jnp.float32) * 0.02
    w2 = jax.random.normal(k2, (hidden, dim), dtype=jnp.float32) * 0.02

    # --- one-time weight prep (model init), tk=256 -> 3 hidden tiles ---------
    w1p, w3p, w2p, tk256 = prepare_ffn_weights(w1, w2, w3, tk=256)

    out = jax.block_until_ready(feed_forward(x, w1p, w3p, w2p, tk=tk256))
    ref = feed_forward_ref(x, w1, w2, w3)
    assert out.shape == (B, S, dim)
    assert jnp.allclose(out, ref, atol=1e-4, rtol=1e-4), "mismatch vs reference"

    # --- ragged M (tail padding) + hidden padding (tk=512 pads 768 -> 1024) --
    w1q, w3q, w2q, tk512 = prepare_ffn_weights(w1, w2, w3, tk=512)
    B2, S2 = 3, 5
    x2 = jax.random.normal(kx, (B2, S2, dim), dtype=jnp.float32)
    out2 = jax.block_until_ready(feed_forward(x2, w1q, w3q, w2q, tk=tk512, tm=8))
    ref2 = feed_forward_ref(x2, w1, w2, w3)
    assert out2.shape == (B2, S2, dim)
    assert jnp.allclose(out2, ref2, atol=1e-4, rtol=1e-4), \
        "mismatch vs reference (tail/hidden-padded)"

    # --- bf16 operands (f32 accumulator scratch path) ------------------------
    xb = x.astype(jnp.bfloat16)
    w1b, w3b, w2b, tkb = prepare_ffn_weights(
        w1.astype(jnp.bfloat16), w2.astype(jnp.bfloat16),
        w3.astype(jnp.bfloat16), tk=256)
    outb = jax.block_until_ready(feed_forward(xb, w1b, w3b, w2b, tk=tkb))
    assert outb.shape == (B, S, dim) and outb.dtype == jnp.bfloat16
    assert jnp.allclose(outb.astype(jnp.float32), ref, atol=1e-2, rtol=1e-1), \
        "mismatch vs reference (bf16)"

    print("KERNEL_OK")
</pallas_src>

<mosaic_0001>
module attributes {stable_mosaic.version = 11 : i64} {
  func.func @_ffn_kernel_f32out(%arg0: i32, %arg1: i32, %arg2: memref<16x128xf32, #tpu.memory_space<vmem>>, %arg3: memref<128x256xf32, #tpu.memory_space<vmem>>, %arg4: memref<128x256xf32, #tpu.memory_space<vmem>>, %arg5: memref<256x128xf32, #tpu.memory_space<vmem>>, %arg6: memref<16x128xf32, #tpu.memory_space<vmem>>) attributes {dimension_semantics = [#tpu.dimension_semantics<parallel>, #tpu.dimension_semantics<arbitrary>], iteration_bounds = array<i64: 1, 3>, scalar_prefetch = 0 : i64, scratch_operands = 0 : i64, tpu.core_type = #tpu.core_type<tc>, window_params = [{transform_indices = @transform_0, window_bounds = array<i64: 16, 128>}, {transform_indices = @transform_1, window_bounds = array<i64: 128, 256>}, {transform_indices = @transform_2, window_bounds = array<i64: 128, 256>}, {transform_indices = @transform_3, window_bounds = array<i64: 256, 128>}, {transform_indices = @transform_4, window_bounds = array<i64: 16, 128>}]} {
    %c0_i32 = arith.constant 0 : i32
    %0 = arith.cmpi eq, %arg1, %c0_i32 : i32
    %1 = arith.extui %0 : i1 to i32
    %c0_i32_0 = arith.constant 0 : i32
    %2 = arith.cmpi ne, %1, %c0_i32_0 : i32
    scf.if %2 {
      %cst_15 = arith.constant 0.000000e+00 : f32
      %20 = vector.broadcast %cst_15 : f32 to vector<16x128xf32>
      %c0_16 = arith.constant 0 : index
      %c0_17 = arith.constant 0 : index
      %21 = vector.load %arg6[%c0_16, %c0_17] : memref<16x128xf32, #tpu.memory_space<vmem>>, vector<16x128xf32>
      tpu.vector_store %arg6[%c0_16, %c0_17], %20 {strides = array<i32>} : memref<16x128xf32, #tpu.memory_space<vmem>>, vector<16x128xf32>,
    } else {
    }
    %c0 = arith.constant 0 : index
    %c0_1 = arith.constant 0 : index
    %3 = vector.load %arg2[%c0, %c0_1] : memref<16x128xf32, #tpu.memory_space<vmem>>, vector<16x128xf32>
    %c0_2 = arith.constant 0 : index
    %c0_3 = arith.constant 0 : index
    %4 = vector.load %arg3[%c0_2, %c0_3] : memref<128x256xf32, #tpu.memory_space<vmem>>, vector<128x256xf32>
    %cst = arith.constant dense<0.000000e+00> : vector<16x256xf32>
    %5 = tpu.matmul %3, %4, %cst {dimension_numbers = #tpu.dot_dimension_numbers<[1], [0], [0], [1], [0, 0, 1, 1], [], []>} : vector<16x128xf32>, vector<128x256xf32>, vector<16x256xf32> -> vector<16x256xf32>
    %c0_4 = arith.constant 0 : index
    %c0_5 = arith.constant 0 : index
    %6 = vector.load %arg4[%c0_4, %c0_5] : memref<128x256xf32, #tpu.memory_space<vmem>>, vector<128x256xf32>
    %cst_6 = arith.constant dense<0.000000e+00> : vector<16x256xf32>
    %7 = tpu.matmul %3, %6, %cst_6 {dimension_numbers = #tpu.dot_dimension_numbers<[1], [0], [0], [1], [0, 0, 1, 1], [], []>} : vector<16x128xf32>, vector<128x256xf32>, vector<16x256xf32> -> vector<16x256xf32>
    %8 = arith.negf %5 : vector<16x256xf32>
    %9 = math.exp %8 : vector<16x256xf32>
    %cst_7 = arith.constant 1.000000e+00 : f32
    %10 = vector.broadcast %cst_7 : f32 to vector<16x256xf32>
    %11 = arith.addf %10, %9 : vector<16x256xf32>
    %12 = arith.divf %10, %11 : vector<16x256xf32>
    %13 = arith.mulf %5, %12 : vector<16x256xf32>
    %14 = arith.mulf %13, %7 : vector<16x256xf32>
    %c0_8 = arith.constant 0 : index
    %c0_9 = arith.constant 0 : index
    %15 = vector.load %arg6[%c0_8, %c0_9] : memref<16x128xf32, #tpu.memory_space<vmem>>, vector<16x128xf32>
    %c0_10 = arith.constant 0 : index
    %c0_11 = arith.constant 0 : index
    %16 = vector.load %arg5[%c0_10, %c0_11] : memref<256x128xf32, #tpu.memory_space<vmem>>, vector<256x128xf32>
    %cst_12 = arith.constant dense<0.000000e+00> : vector<16x128xf32>
    %17 = tpu.matmul %14, %16, %cst_12 {dimension_numbers = #tpu.dot_dimension_numbers<[1], [0], [0], [1], [0, 0, 1, 1], [], []>} : vector<16x256xf32>, vector<256x128xf32>, vector<16x128xf32> -> vector<16x128xf32>
    %18 = arith.addf %15, %17 : vector<16x128xf32>
    %c0_13 = arith.constant 0 : index
    %c0_14 = arith.constant 0 : index
    %19 = vector.load %arg6[%c0_13, %c0_14] : memref<16x128xf32, #tpu.memory_space<vmem>>, vector<16x128xf32>
    tpu.vector_store %arg6[%c0_13, %c0_14], %18 {strides = array<i32>} : memref<16x128xf32, #tpu.memory_space<vmem>>, vector<16x128xf32>,
    return
  }
  func.func @transform_0(%arg0: i32, %arg1: i32) -> (i32, i32) {
    %c0_i32 = arith.constant 0 : i32
    %c0_i32_0 = arith.constant 0 : i32
    return %arg0, %c0_i32 : i32, i32
  }
  func.func @transform_1(%arg0: i32, %arg1: i32) -> (i32, i32) {
    %c0_i32 = arith.constant 0 : i32
    %c0_i32_0 = arith.constant 0 : i32
    return %c0_i32, %arg1 : i32, i32
  }
  func.func @transform_2(%arg0: i32, %arg1: i32) -> (i32, i32) {
    %c0_i32 = arith.constant 0 : i32
    %c0_i32_0 = arith.constant 0 : i32
    return %c0_i32, %arg1 : i32, i32
  }
  func.func @transform_3(%arg0: i32, %arg1: i32) -> (i32, i32) {
    %c0_i32 = arith.constant 0 : i32
    %c0_i32_0 = arith.constant 0 : i32
    return %arg1, %c0_i32 : i32, i32
  }
  func.func @transform_4(%arg0: i32, %arg1: i32) -> (i32, i32) {
    %c0_i32 = arith.constant 0 : i32
    %c0_i32_0 = arith.constant 0 : i32
    return %arg0, %c0_i32 : i32, i32
  }
}

</mosaic_0001>

<llo_original>
// kernel: _feed_forward_impl.1
$region0: #{_feed_forward_impl.1}
  #allocation0 [shape = 'u32[]', space=smem, size = 0x4, offset = 0x4, fixed_abs, tag = 'smem constant byte address 0x4 - core index']
  #allocation1 [shape = 'u32[72,128]{1,0:T(1,128)}', space=vmem, size = 0x9000, scoped, tag = 'internal scratch']
  %s0 = inlined_call_operand.hbm [shape: f32[16,128], index: 0, kind: input, shape index: {}]
  %s1 = inlined_call_operand.hbm [shape: f32[128,768], index: 1, kind: input, shape index: {}]
  %s2 = inlined_call_operand.hbm [shape: f32[128,768], index: 2, kind: input, shape index: {}]
  %s3 = inlined_call_operand.hbm [shape: f32[768,128], index: 3, kind: input, shape index: {}]
  %s4 = inlined_call_operand.hbm [shape: f32[16,128], index: 4, kind: output, shape index: {}]
  %s5 = sld [smem:[#allocation0]]
  $region69: #{_feed_forward_impl.1} parent=0
    _
  %s7 = ssub.s32 1, %s5
  %s8 = scalar_select 0, %s7, %s5
  $region1: #{_feed_forward_impl.1} parent=0
    #allocation2 [shape = 'u8[8192]{0}', space=vmem, size = 0x2000, scoped, tag = 'input window, operand 0, single buffered']
    #allocation3 [shape = 's32[2]{0}', space=sflag, size = 0x8, scoped, tag = 'scoped memory for _feed_forward_impl.1']
    #allocation4 [shape = 's32[2]{0}', space=sflag, size = 0x8, scoped, tag = 'scoped memory for _feed_forward_impl.1']
    #allocation5 [shape = 'u8[262144]{0}', space=vmem, size = 0x40000, scoped, tag = 'input window, operand 1']
    #allocation6 [shape = 's32[2]{0}', space=sflag, size = 0x8, scoped, tag = 'scoped memory for _feed_forward_impl.1']
    #allocation7 [shape = 'u8[262144]{0}', space=vmem, size = 0x40000, scoped, tag = 'input window, operand 2']
    #allocation8 [shape = 'u8[262144]{0}', space=vmem, size = 0x40000, scoped, tag = 'input window, operand 3']
    #allocation9 [shape = 's32[2]{0}', space=sflag, size = 0x8, scoped, tag = 'scoped memory for _feed_forward_impl.1']
    #allocation10 [shape = 'u8[8192]{0}', space=vmem, size = 0x2000, scoped, tag = 'output window, operand 0, single buffered']
    %9 = vsyncpa [#allocation3], 0
    %10 = vsyncpa [#allocation6], 0
    %s11 = scalar_lea.sflag [#allocation6], 1
    %12 = vsyncpa %s11, 0
    %13 = vsyncpa [#allocation9], 0
    %s14 = scalar_lea.sflag [#allocation9], 1
    %15 = vsyncpa %s14, 0
    %16 = vsyncpa [#allocation4], 0
    loop: start=0, step=1, limit=5
    $region2: #{_feed_forward_impl.1} parent=1 // loop_pre_header
      _
    $region3: #{_feed_forward_impl.1} parent=1 // loop_header
      %s18 = sphi 0, %s22
      %p19 = scmp.ge.s32.totalorder %s18, 5
      %s25 = sphi 0, %s37
      %s26 = sphi 0, %s33
      %s27 = sphi 0, %s25
      %s28 = sphi 0, %s26
      %s29 = sphi 0, %s27
      %s30 = sphi 0, %s28
      %s40 = sphi 0, %s42
      %s43 = sphi 0, %s40
      %s44 = sphi 0, %s43
      %s60 = sphi 0, %s44
      %s66 = sphi 0, %s68
      %s69 = sphi 0, %s66
      %s70 = sphi 0, %s69
      %s86 = sphi 0, %s70
      %s92 = sphi 0, %s94
      %s95 = sphi 0, %s92
      %s96 = sphi 0, %s95
      %s112 = sphi 0, %s96
      %s118 = sphi 0, %s120
      %s121 = sphi 0, %s118
      %s122 = sphi 0, %s121
      %s138 = sphi 0, %s122
      %s144 = sphi 0, %s146
      %s147 = sphi 0, %s144
      %s148 = sphi 0, %s147
      %s164 = sphi 0, %s148
    $region4: #{_feed_forward_impl.1} parent=1 // loop_header_branch
      %21 = sbr.rel (%p19) target = $region8
    $region5: #{_feed_forward_impl.1} parent=1 // loop_body
      %s23 = ssub.s32 %s18, 1
      %s24 = ssub.s32 %s18, 2
      %s31 = sadd.s32 1, %s26
      %p32 = scmp.ge.s32.totalorder %s31, 3
      %s33 = scalar_select %p32, 0, %s31
      %s34 = sadd.s32 1, %s25
      %s35 = scalar_select %p32, %s34, %s25
      %p36 = scmp.ge.s32.totalorder %s35, 1
      %s37 = scalar_select %p36, 0, %s35
      %s38 = ssub.s32 %s25, %s37
      %p39 = scmp.eq.s32.totalorder %s38, 0
      %s41 = sadd.s32 %s40, 1
      %s42 = scalar_select %p39, %s40, %s41
      %p45 = pneg %p39
      %p46 = scmp.eq.s32.totalorder %s18, 2
      %p47 = por %p45, %p46
      %p48 = scmp.ne.s32.totalorder %s40, %s43
      %p49 = scmp.eq.s32.totalorder %s18, 0
      %p50 = por %p48, %p49
      %p51 = scmp.ne.s32.totalorder %s40, %s43
      %p52 = scmp.eq.s32.totalorder %s23, 2
      %p53 = por %p51, %p52
      %p54 = scmp.ne.s32.totalorder %s43, %s44
      %p55 = scmp.eq.s32.totalorder %s23, 0
      %p56 = por %p54, %p55
      %p57 = scmp.ne.s32.totalorder %s43, %s44
      %p58 = scmp.eq.s32.totalorder %s24, 2
      %p59 = por %p57, %p58
      %p61 = scmp.ne.s32.totalorder %s44, %s60
      %p62 = scmp.eq.s32.totalorder %s24, 0
      %p63 = por %p61, %p62
      %s64 = ssub.s32 %s26, %s33
      %p65 = scmp.eq.s32.totalorder %s64, 0
      %s67 = sadd.s32 %s66, 1
      %s68 = scalar_select %p65, %s66, %s67
      %p71 = pneg %p65
      %p72 = scmp.eq.s32.totalorder %s18, 2
      %p73 = por %p71, %p72
      %p74 = scmp.ne.s32.totalorder %s66, %s69
      %p75 = scmp.eq.s32.totalorder %s18, 0
      %p76 = por %p74, %p75
      %p77 = scmp.ne.s32.totalorder %s66, %s69
      %p78 = scmp.eq.s32.totalorder %s23, 2
      %p79 = por %p77, %p78
      %p80 = scmp.ne.s32.totalorder %s69, %s70
      %p81 = scmp.eq.s32.totalorder %s23, 0
      %p82 = por %p80, %p81
      %p83 = scmp.ne.s32.totalorder %s69, %s70
      %p84 = scmp.eq.s32.totalorder %s24, 2
      %p85 = por %p83, %p84
      %p87 = scmp.ne.s32.totalorder %s70, %s86
      %p88 = scmp.eq.s32.totalorder %s24, 0
      %p89 = por %p87, %p88
      %s90 = ssub.s32 %s26, %s33
      %p91 = scmp.eq.s32.totalorder %s90, 0
      %s93 = sadd.s32 %s92, 1
      %s94 = scalar_select %p91, %s92, %s93
      %p97 = pneg %p91
      %p98 = scmp.eq.s32.totalorder %s18, 2
      %p99 = por %p97, %p98
      %p100 = scmp.ne.s32.totalorder %s92, %s95
      %p101 = scmp.eq.s32.totalorder %s18, 0
      %p102 = por %p100, %p101
      %p103 = scmp.ne.s32.totalorder %s92, %s95
      %p104 = scmp.eq.s32.totalorder %s23, 2
      %p105 = por %p103, %p104
      %p106 = scmp.ne.s32.totalorder %s95, %s96
      %p107 = scmp.eq.s32.totalorder %s23, 0
      %p108 = por %p106, %p107
      %p109 = scmp.ne.s32.totalorder %s95, %s96
      %p110 = scmp.eq.s32.totalorder %s24, 2
      %p111 = por %p109, %p110
      %p113 = scmp.ne.s32.totalorder %s96, %s112
      %p114 = scmp.eq.s32.totalorder %s24, 0
      %p115 = por %p113, %p114
      %s116 = ssub.s32 %s26, %s33
      %p117 = scmp.eq.s32.totalorder %s116, 0
      %s119 = sadd.s32 %s118, 1
      %s120 = scalar_select %p117, %s118, %s119
      %p123 = pneg %p117
      %p124 = scmp.eq.s32.totalorder %s18, 2
      %p125 = por %p123, %p124
      %p126 = scmp.ne.s32.totalorder %s118, %s121
      %p127 = scmp.eq.s32.totalorder %s18, 0
      %p128 = por %p126, %p127
      %p129 = scmp.ne.s32.totalorder %s118, %s121
      %p130 = scmp.eq.s32.totalorder %s23, 2
      %p131 = por %p129, %p130
      %p132 = scmp.ne.s32.totalorder %s121, %s122
      %p133 = scmp.eq.s32.totalorder %s23, 0
      %p134 = por %p132, %p133
      %p135 = scmp.ne.s32.totalorder %s121, %s122
      %p136 = scmp.eq.s32.totalorder %s24, 2
      %p137 = por %p135, %p136
      %p139 = scmp.ne.s32.totalorder %s122, %s138
      %p140 = scmp.eq.s32.totalorder %s24, 0
      %p141 = por %p139, %p140
      %s142 = ssub.s32 %s25, %s37
      %p143 = scmp.eq.s32.totalorder %s142, 0
      %s145 = sadd.s32 %s144, 1
      %s146 = scalar_select %p143, %s144, %s145
      %p149 = pneg %p143
      %p150 = scmp.eq.s32.totalorder %s18, 2
      %p151 = por %p149, %p150
      %p152 = scmp.ne.s32.totalorder %s144, %s147
      %p153 = scmp.eq.s32.totalorder %s18, 0
      %p154 = por %p152, %p153
      %p155 = scmp.ne.s32.totalorder %s144, %s147
      %p156 = scmp.eq.s32.totalorder %s23, 2
      %p157 = por %p155, %p156
      %p158 = scmp.ne.s32.totalorder %s147, %s148
      %p159 = scmp.eq.s32.totalorder %s23, 0
      %p160 = por %p158, %p159
      %p161 = scmp.ne.s32.totalorder %s147, %s148
      %p162 = scmp.eq.s32.totalorder %s24, 2
      %p163 = por %p161, %p162
      %p165 = scmp.ne.s32.totalorder %s148, %s164
      %p166 = scmp.eq.s32.totalorder %s24, 0
      %p167 = por %p165, %p166
      %p168 = scmp.le.s32.totalorder 1, %s18
      %p169 = scmp.lt.s32.totalorder %s18, 4
      %p170 = pnand %p168, %p169
      %p171 = pneg %p170
      // Predicated region
      $region9: #{_feed_forward_impl.1} parent=5 // pred_check
        _
      $region10: #{_feed_forward_impl.1} parent=5 // pred_check_branch
        %173 = sbr.rel (%p170) target = $region12
      $region11: #{_feed_forward_impl.1} parent=5 // pred_region
        %s174 = ssub.s32 %s18, 1
        // Predicated region
        $region13: #{_feed_forward_impl.1} parent=11 // pred_check
          %p175 = pneg %p56
        $region14: #{_feed_forward_impl.1} parent=11 // pred_check_branch
          %177 = sbr.rel (%p175) target = $region16
        $region15: #{_feed_forward_impl.1} parent=11 // pred_region
          %s178 = smul.u32 2, %s27
          %180 = vsyncadd [#allocation3], 0
          %s181 = smul.addr %s178, 8
          %s182 = scalar_lea.hbm %s0, %s181
          %s183 = sshll.u32 %s182, 4
          %s184 = int_to_ptr.hbm [resolvable:$true] %s183
          %s185 = sshll.u32 [#allocation2], 4
          %s186 = int_to_ptr.vmem [resolvable:$true] %s185
          %191 = dma.hbm_to_vmem [thread:$0]  %s184, 256, %s186, [#allocation3], 128, 128, 8
        $region16: #{_feed_forward_impl.1} parent=11 // pred_fallthru
          _
      $region12: #{_feed_forward_impl.1} parent=5 // pred_fallthru
        _
      %p192 = scmp.lt.s32.totalorder %s18, 3
      // Predicated region
      $region17: #{_feed_forward_impl.1} parent=5 // pred_check
        %p193 = pneg %p192
      $region18: #{_feed_forward_impl.1} parent=5 // pred_check_branch
        %195 = sbr.rel (%p193) target = $region20
      $region19: #{_feed_forward_impl.1} parent=5 // pred_region
        // Predicated region
        $region21: #{_feed_forward_impl.1} parent=19 // pred_check
          %p196 = pneg %p76
        $region22: #{_feed_forward_impl.1} parent=19 // pred_check_branch
          %198 = sbr.rel (%p196) target = $region24
        $region23: #{_feed_forward_impl.1} parent=19 // pred_region
          %s199 = sand.u32 %s18, 1
          %s200 = scalar_lea.sflag [#allocation6], %s199
          %s201 = sand.u32 %s66, 1
          %s202 = smul.addr %s201, 256
          %s203 = scalar_lea.vmem [#allocation5], %s202
          %s204 = smul.u32 2, %s26
          %206 = vsyncadd %s200, 0
          %s207 = smul.addr %s204, 8
          %s208 = scalar_lea.hbm %s1, %s207
          %s209 = sshll.u32 %s208, 4
          %s210 = int_to_ptr.hbm [resolvable:$true] %s209
          %s211 = sshll.u32 %s203, 4
          %s212 = int_to_ptr.vmem [resolvable:$true] %s211
          %217 = dma.hbm_to_vmem [thread:$0]  %s210, 4096, %s212, %s200, 768, 256, 16
        $region24: #{_feed_forward_impl.1} parent=19 // pred_fallthru
          _
        // Predicated region
        $region25: #{_feed_forward_impl.1} parent=19 // pred_check
          %p218 = pneg %p102
        $region26: #{_feed_forward_impl.1} parent=19 // pred_check_branch
          %220 = sbr.rel (%p218) target = $region28
        $region27: #{_feed_forward_impl.1} parent=19 // pred_region
          %s221 = sand.u32 %s18, 1
          %s222 = scalar_lea.sflag [#allocation6], %s221
          %s223 = sand.u32 %s92, 1
          %s224 = smul.addr %s223, 256
          %s225 = scalar_lea.vmem [#allocation7], %s224
          %s226 = smul.u32 2, %s26
          %228 = vsyncadd %s222, 0
          %s229 = smul.addr %s226, 8
          %s230 = scalar_lea.hbm %s2, %s229
          %s231 = sshll.u32 %s230, 4
          %s232 = int_to_ptr.hbm [resolvable:$true] %s231
          %s233 = sshll.u32 %s225, 4
          %s234 = int_to_ptr.vmem [resolvable:$true] %s233
          %239 = dma.hbm_to_vmem [thread:$0]  %s232, 4096, %s234, %s222, 768, 256, 16
        $region28: #{_feed_forward_impl.1} parent=19 // pred_fallthru
          _
        // Predicated region
        $region29: #{_feed_forward_impl.1} parent=19 // pred_check
          %p240 = pneg %p128
        $region30: #{_feed_forward_impl.1} parent=19 // pred_check_branch
          %242 = sbr.rel (%p240) target = $region32
        $region31: #{_feed_forward_impl.1} parent=19 // pred_region
          %s243 = sand.u32 %s118, 1
          %s244 = scalar_lea.sflag [#allocation9], %s243
          %s245 = sand.u32 %s118, 1
          %s246 = smul.addr %s245, 256
          %s247 = scalar_lea.vmem [#allocation8], %s246
          %s248 = smul.u32 32, %s26
          %250 = vsyncadd %s244, 0
          %s251 = smul.addr %s248, 8
          %s252 = scalar_lea.hbm %s3, %s251
          %s253 = sshll.u32 %s252, 4
          %s254 = int_to_ptr.hbm [resolvable:$true] %s253
          %s255 = sshll.u32 %s247, 4
          %s256 = int_to_ptr.vmem [resolvable:$true] %s255
          %261 = dma.hbm_to_vmem [thread:$0]  %s254, 4096, %s256, %s244, 128, 128, 8
        $region32: #{_feed_forward_impl.1} parent=19 // pred_fallthru
          _
      $region20: #{_feed_forward_impl.1} parent=5 // pred_fallthru
        _
      %p262 = scmp.le.s32.totalorder 1, %s18
      %p263 = scmp.lt.s32.totalorder %s18, 4
      %p264 = pnand %p262, %p263
      %p265 = pneg %p264
      // Predicated region
      $region33: #{_feed_forward_impl.1} parent=5 // pred_check
        _
      $region34: #{_feed_forward_impl.1} parent=5 // pred_check_branch
        %267 = sbr.rel (%p264) target = $region36
      $region35: #{_feed_forward_impl.1} parent=5 // pred_region
        %s268 = ssub.s32 %s18, 1
        // Predicated region
        $region37: #{_feed_forward_impl.1} parent=35 // pred_check
          %p269 = pneg %p56
        $region38: #{_feed_forward_impl.1} parent=35 // pred_check_branch
          %271 = sbr.rel (%p269) target = $region40
        $region39: #{_feed_forward_impl.1} parent=35 // pred_region
          %273 = dma.done [#allocation3], 256
        $region40: #{_feed_forward_impl.1} parent=35 // pred_fallthru
          _
        %s274 = sand.u32 %s23, 1
        %s275 = scalar_lea.sflag [#allocation6], %s274
        %s276 = sand.u32 %s69, 1
        %s277 = smul.addr %s276, 256
        %s278 = scalar_lea.vmem [#allocation5], %s277
        // Predicated region
        $region41: #{_feed_forward_impl.1} parent=35 // pred_check
          %p279 = pneg %p82
        $region42: #{_feed_forward_impl.1} parent=35 // pred_check_branch
          %281 = sbr.rel (%p279) target = $region44
        $region43: #{_feed_forward_impl.1} parent=35 // pred_region
          %283 = dma.done %s275, 4096
        $region44: #{_feed_forward_impl.1} parent=35 // pred_fallthru
          _
        %s284 = sand.u32 %s23, 1
        %s285 = scalar_lea.sflag [#allocation6], %s284
        %s286 = sand.u32 %s95, 1
        %s287 = smul.addr %s286, 256
        %s288 = scalar_lea.vmem [#allocation7], %s287
        // Predicated region
        $region45: #{_feed_forward_impl.1} parent=35 // pred_check
          %p289 = pneg %p108
        $region46: #{_feed_forward_impl.1} parent=35 // pred_check_branch
          %291 = sbr.rel (%p289) target = $region48
        $region47: #{_feed_forward_impl.1} parent=35 // pred_region
          %293 = dma.done %s285, 4096
        $region48: #{_feed_forward_impl.1} parent=35 // pred_fallthru
          _
        %s294 = sand.u32 %s121, 1
        %s295 = scalar_lea.sflag [#allocation9], %s294
        %s296 = sand.u32 %s121, 1
        %s297 = smul.addr %s296, 256
        %s298 = scalar_lea.vmem [#allocation8], %s297
        // Predicated region
        $region49: #{_feed_forward_impl.1} parent=35 // pred_check
          %p299 = pneg %p134
        $region50: #{_feed_forward_impl.1} parent=35 // pred_check_branch
          %301 = sbr.rel (%p299) target = $region52
        $region51: #{_feed_forward_impl.1} parent=35 // pred_region
          %303 = dma.done %s295, 4096
        $region52: #{_feed_forward_impl.1} parent=35 // pred_fallthru
          _
        %p304 = pneg %p56
        %p305 = pneg %p53
        %s306 = sand.u32 %s23, 1
        %s307 = scalar_lea.sflag [#allocation6], %s306
        %s308 = sand.u32 %s69, 1
        %s309 = smul.addr %s308, 256
        %s310 = scalar_lea.vmem [#allocation5], %s309
        %p311 = pneg %p82
        %p312 = pneg %p79
        %s313 = sand.u32 %s23, 1
        %s314 = scalar_lea.sflag [#allocation6], %s313
        %s315 = sand.u32 %s95, 1
        %s316 = smul.addr %s315, 256
        %s317 = scalar_lea.vmem [#allocation7], %s316
        %p318 = pneg %p108
        %p319 = pneg %p105
        %s320 = sand.u32 %s121, 1
        %s321 = scalar_lea.sflag [#allocation9], %s320
        %s322 = sand.u32 %s121, 1
        %s323 = smul.addr %s322, 256
        %s324 = scalar_lea.vmem [#allocation8], %s323
        %p325 = pneg %p134
        %p326 = pneg %p131
        %p327 = pneg %p160
        %p328 = pneg %p157
        %s329 = smul.u32 2, %s27
        %s330 = smul.u32 2, %s28
        %s331 = smul.u32 2, %s28
        %s332 = smul.u32 32, %s28
        %s333 = smul.u32 2, %s27
        %p334 = scmp.eq.s32.totalorder %s28, 0
        // Predicated region
        $region53: #{_feed_forward_impl.1} parent=35 // pred_check
          %p335 = pneg %p334
        $region54: #{_feed_forward_impl.1} parent=35 // pred_check_branch
          %337 = sbr.rel (%p335) target = $region56
        $region55: #{_feed_forward_impl.1} parent=35 // pred_region
          %338 = vst [vmem:[#allocation10] sm:$0xff] 0.0
          %339 = vst [vmem:[#allocation10 + $0x8] sm:$0xff] 0.0
        $region56: #{_feed_forward_impl.1} parent=35 // pred_fallthru
          _
        %v340 = vld [vmem:[#allocation2] sm:$0xff]
        %v341 = vld [vmem:[#allocation2 + $0x8] sm:$0xff]
        %v342 = vld [vmem:[%s278] sm:$0xff]
        %v343 = vld [vmem:[%s278 + $0x8] sm:$0xff]
        %v344 = vld [vmem:[%s278 + $0x10] sm:$0xff]
        %v345 = vld [vmem:[%s278 + $0x18] sm:$0xff]
        %v346 = vld [vmem:[%s278 + $0x20] sm:$0xff]
        %v347 = vld [vmem:[%s278 + $0x28] sm:$0xff]
        %v348 = vld [vmem:[%s278 + $0x30] sm:$0xff]
        %v349 = vld [vmem:[%s278 + $0x38] sm:$0xff]
        %v350 = vld [vmem:[%s278 + $0x40] sm:$0xff]
        %v351 = vld [vmem:[%s278 + $0x48] sm:$0xff]
        %v352 = vld [vmem:[%s278 + $0x50] sm:$0xff]
        %v353 = vld [vmem:[%s278 + $0x58] sm:$0xff]
        %v354 = vld [vmem:[%s278 + $0x60] sm:$0xff]
        %v355 = vld [vmem:[%s278 + $0x68] sm:$0xff]
        %v356 = vld [vmem:[%s278 + $0x70] sm:$0xff]
        %v357 = vld [vmem:[%s278 + $0x78] sm:$0xff]
        %v358 = vld [vmem:[%s278 + $0x80] sm:$0xff]
        %v359 = vld [vmem:[%s278 + $0x88] sm:$0xff]
        %v360 = vld [vmem:[%s278 + $0x90] sm:$0xff]
        %v361 = vld [vmem:[%s278 + $0x98] sm:$0xff]
        %v362 = vld [vmem:[%s278 + $0xa0] sm:$0xff]
        %v363 = vld [vmem:[%s278 + $0xa8] sm:$0xff]
        %v364 = vld [vmem:[%s278 + $0xb0] sm:$0xff]
        %v365 = vld [vmem:[%s278 + $0xb8] sm:$0xff]
        %v366 = vld [vmem:[%s278 + $0xc0] sm:$0xff]
        %v367 = vld [vmem:[%s278 + $0xc8] sm:$0xff]
        %v368 = vld [vmem:[%s278 + $0xd0] sm:$0xff]
        %v369 = vld [vmem:[%s278 + $0xd8] sm:$0xff]
        %v370 = vld [vmem:[%s278 + $0xe0] sm:$0xff]
        %v371 = vld [vmem:[%s278 + $0xe8] sm:$0xff]
        %v372 = vld [vmem:[%s278 + $0xf0] sm:$0xff]
        %v373 = vld [vmem:[%s278 + $0xf8] sm:$0xff]
        %374 = vmatpush.msra.mxu0 %v372
        %375 = vmatpush.msra.mxu0 %v370
        %376 = vmatpush.msra.mxu0 %v368
        %377 = vmatpush.msra.mxu0 %v366
        %378 = vmatpush.msra.mxu0 %v364
        %379 = vmatpush.msra.mxu0 %v362
        %380 = vmatpush.msra.mxu0 %v360
        %381 = vmatpush.msra.mxu0 %v358
        %382 = vmatpush.msra.mxu0 %v356
        %383 = vmatpush.msra.mxu0 %v354
        %384 = vmatpush.msra.mxu0 %v352
        %385 = vmatpush.msra.mxu0 %v350
        %386 = vmatpush.msra.mxu0 %v348
        %387 = vmatpush.msra.mxu0 %v346
        %388 = vmatpush.msra.mxu0 %v344
        %389 = vmatpush.msra.mxu0 %v342
        %390 = vmatmul.f32.gmra.mxu0 %v340
        %v391 = vpop.f32.mrf.mxu0
        %v392 = vadd.f32 0.0, %v391
        %393 = vmatmul.f32.gmra.mxu0 %v341
        %v394 = vpop.f32.mrf.mxu0
        %v395 = vadd.f32 0.0, %v394
        %396 = vdwg.mxu0
        %397 = vmatpush.msra.mxu0 %v373
        %398 = vmatpush.msra.mxu0 %v371
        %399 = vmatpush.msra.mxu0 %v369
        %400 = vmatpush.msra.mxu0 %v367
        %401 = vmatpush.msra.mxu0 %v365
        %402 = vmatpush.msra.mxu0 %v363
        %403 = vmatpush.msra.mxu0 %v361
        %404 = vmatpush.msra.mxu0 %v359
        %405 = vmatpush.msra.mxu0 %v357
        %406 = vmatpush.msra.mxu0 %v355
        %407 = vmatpush.msra.mxu0 %v353
        %408 = vmatpush.msra.mxu0 %v351
        %409 = vmatpush.msra.mxu0 %v349
        %410 = vmatpush.msra.mxu0 %v347
        %411 = vmatpush.msra.mxu0 %v345
        %412 = vmatpush.msra.mxu0 %v343
        %413 = vmatmul.f32.gmra.mxu0 %v340
        %v414 = vpop.f32.mrf.mxu0
        %v415 = vadd.f32 0.0, %v414
        %416 = vmatmul.f32.gmra.mxu0 %v341
        %v417 = vpop.f32.mrf.mxu0
        %v418 = vadd.f32 0.0, %v417
        %419 = vdwg.mxu0
        %v420 = vld [vmem:[%s288] sm:$0xff]
        %v421 = vld [vmem:[%s288 + $0x8] sm:$0xff]
        %v422 = vld [vmem:[%s288 + $0x10] sm:$0xff]
        %v423 = vld [vmem:[%s288 + $0x18] sm:$0xff]
        %v424 = vld [vmem:[%s288 + $0x20] sm:$0xff]
        %v425 = vld [vmem:[%s288 + $0x28] sm:$0xff]
        %v426 = vld [vmem:[%s288 + $0x30] sm:$0xff]
        %v427 = vld [vmem:[%s288 + $0x38] sm:$0xff]
        %v428 = vld [vmem:[%s288 + $0x40] sm:$0xff]
        %v429 = vld [vmem:[%s288 + $0x48] sm:$0xff]
        %v430 = vld [vmem:[%s288 + $0x50] sm:$0xff]
        %v431 = vld [vmem:[%s288 + $0x58] sm:$0xff]
        %v432 = vld [vmem:[%s288 + $0x60] sm:$0xff]
        %v433 = vld [vmem:[%s288 + $0x68] sm:$0xff]
        %v434 = vld [vmem:[%s288 + $0x70] sm:$0xff]
        %v435 = vld [vmem:[%s288 + $0x78] sm:$0xff]
        %v436 = vld [vmem:[%s288 + $0x80] sm:$0xff]
        %v437 = vld [vmem:[%s288 + $0x88] sm:$0xff]
        %v438 = vld [vmem:[%s288 + $0x90] sm:$0xff]
        %v439 = vld [vmem:[%s288 + $0x98] sm:$0xff]
        %v440 = vld [vmem:[%s288 + $0xa0] sm:$0xff]
        %v441 = vld [vmem:[%s288 + $0xa8] sm:$0xff]
        %v442 = vld [vmem:[%s288 + $0xb0] sm:$0xff]
        %v443 = vld [vmem:[%s288 + $0xb8] sm:$0xff]
        %v444 = vld [vmem:[%s288 + $0xc0] sm:$0xff]
        %v445 = vld [vmem:[%s288 + $0xc8] sm:$0xff]
        %v446 = vld [vmem:[%s288 + $0xd0] sm:$0xff]
        %v447 = vld [vmem:[%s288 + $0xd8] sm:$0xff]
        %v448 = vld [vmem:[%s288 + $0xe0] sm:$0xff]
        %v449 = vld [vmem:[%s288 + $0xe8] sm:$0xff]
        %v450 = vld [vmem:[%s288 + $0xf0] sm:$0xff]
        %v451 = vld [vmem:[%s288 + $0xf8] sm:$0xff]
        %452 = vmatpush.msra.mxu0 %v450
        %453 = vmatpush.msra.mxu0 %v448
        %454 = vmatpush.msra.mxu0 %v446
        %455 = vmatpush.msra.mxu0 %v444
        %456 = vmatpush.msra.mxu0 %v442
        %457 = vmatpush.msra.mxu0 %v440
        %458 = vmatpush.msra.mxu0 %v438
        %459 = vmatpush.msra.mxu0 %v436
        %460 = vmatpush.msra.mxu0 %v434
        %461 = vmatpush.msra.mxu0 %v432
        %462 = vmatpush.msra.mxu0 %v430
        %463 = vmatpush.msra.mxu0 %v428
        %464 = vmatpush.msra.mxu0 %v426
        %465 = vmatpush.msra.mxu0 %v424
        %466 = vmatpush.msra.mxu0 %v422
        %467 = vmatpush.msra.mxu0 %v420
        %468 = vmatmul.f32.gmra.mxu0 %v340
        %v469 = vpop.f32.mrf.mxu0
        %v470 = vadd.f32 0.0, %v469
        %471 = vmatmul.f32.gmra.mxu0 %v341
        %v472 = vpop.f32.mrf.mxu0
        %v473 = vadd.f32 0.0, %v472
        %474 = vdwg.mxu0
        %475 = vmatpush.msra.mxu0 %v451
        %476 = vmatpush.msra.mxu0 %v449
        %477 = vmatpush.msra.mxu0 %v447
        %478 = vmatpush.msra.mxu0 %v445
        %479 = vmatpush.msra.mxu0 %v443
        %480 = vmatpush.msra.mxu0 %v441
        %481 = vmatpush.msra.mxu0 %v439
        %482 = vmatpush.msra.mxu0 %v437
        %483 = vmatpush.msra.mxu0 %v435
        %484 = vmatpush.msra.mxu0 %v433
        %485 = vmatpush.msra.mxu0 %v431
        %486 = vmatpush.msra.mxu0 %v429
        %487 = vmatpush.msra.mxu0 %v427
        %488 = vmatpush.msra.mxu0 %v425
        %489 = vmatpush.msra.mxu0 %v423
        %490 = vmatpush.msra.mxu0 %v421
        %491 = vmatmul.f32.gmra.mxu0 %v340
        %v492 = vpop.f32.mrf.mxu0
        %v493 = vadd.f32 0.0, %v492
        %494 = vmatmul.f32.gmra.mxu0 %v341
        %v495 = vpop.f32.mrf.mxu0
        %v496 = vadd.f32 0.0, %v495
        %497 = vdwg.mxu0
        %v498 = vxor.u32 %v392, 2147483648
        %v499 = vxor.u32 %v415, 2147483648
        %v500 = vxor.u32 %v395, 2147483648
        %v501 = vxor.u32 %v418, 2147483648
        %v502 = vmul.f32 %v498, 1.442695
        %v503 = vpow.pop %v502
        %v504 = vmul.f32 %v499, 1.442695
        %v505 = vpow.pop %v504
        %v506 = vmul.f32 %v500, 1.442695
        %v507 = vpow.pop %v506
        %v508 = vmul.f32 %v501, 1.442695
        %v509 = vpow.pop %v508
        %v510 = vadd.f32 %v503, 1.0
        %v511 = vadd.f32 %v505, 1.0
        %v512 = vadd.f32 %v507, 1.0
        %v513 = vadd.f32 %v509, 1.0
        %v514 = vrcp.pop %v510
        %v515 = vmul.f32 %v510, %v514
        %v516 = vsub.f32 1.0, %v515
        %v517 = vmul.f32 %v514, %v516
        %v518 = vadd.f32 %v514, %v517
        %vm519 = vweird.f32 %v510
        %vm520 = vweird.f32 %v514
        %vm521 = vmor %vm519, %vm520
        %v522 = vsel %vm521, %v514, %v518
        %v523 = vand.u32 2147483647, %v510
        %vm524 = vcmp.eq.f32.partialorder %v523, 8.507059e+37
        %v525 = vand.u32 %v510, 2147483648
        %v526 = vor.u32 1.1754944e-38, %v525
        %v527 = vsel %vm524, %v526, %v522
        %v528 = vmul.f32 1.0, %v527
        %v529 = vrcp.pop %v511
        %v530 = vmul.f32 %v511, %v529
        %v531 = vsub.f32 1.0, %v530
        %v532 = vmul.f32 %v529, %v531
        %v533 = vadd.f32 %v529, %v532
        %vm534 = vweird.f32 %v511
        %vm535 = vweird.f32 %v529
        %vm536 = vmor %vm534, %vm535
        %v537 = vsel %vm536, %v529, %v533
        %v538 = vand.u32 2147483647, %v511
        %vm539 = vcmp.eq.f32.partialorder %v538, 8.507059e+37
        %v540 = vand.u32 %v511, 2147483648
        %v541 = vor.u32 1.1754944e-38, %v540
        %v542 = vsel %vm539, %v541, %v537
        %v543 = vmul.f32 1.0, %v542
        %v544 = vrcp.pop %v512
        %v545 = vmul.f32 %v512, %v544
        %v546 = vsub.f32 1.0, %v545
        %v547 = vmul.f32 %v544, %v546
        %v548 = vadd.f32 %v544, %v547
        %vm549 = vweird.f32 %v512
        %vm550 = vweird.f32 %v544
        %vm551 = vmor %vm549, %vm550
        %v552 = vsel %vm551, %v544, %v548
        %v553 = vand.u32 2147483647, %v512
        %vm554 = vcmp.eq.f32.partialorder %v553, 8.507059e+37
        %v555 = vand.u32 %v512, 2147483648
        %v556 = vor.u32 1.1754944e-38, %v555
        %v557 = vsel %vm554, %v556, %v552
        %v558 = vmul.f32 1.0, %v557
        %v559 = vrcp.pop %v513
        %v560 = vmul.f32 %v513, %v559
        %v561 = vsub.f32 1.0, %v560
        %v562 = vmul.f32 %v559, %v561
        %v563 = vadd.f32 %v559, %v562
        %vm564 = vweird.f32 %v513
        %vm565 = vweird.f32 %v559
        %vm566 = vmor %vm564, %vm565
        %v567 = vsel %vm566, %v559, %v563
        %v568 = vand.u32 2147483647, %v513
        %vm569 = vcmp.eq.f32.partialorder %v568, 8.507059e+37
        %v570 = vand.u32 %v513, 2147483648
        %v571 = vor.u32 1.1754944e-38, %v570
        %v572 = vsel %vm569, %v571, %v567
        %v573 = vmul.f32 1.0, %v572
        %v574 = vmul.f32 %v392, %v528
        %v575 = vmul.f32 %v415, %v543
        %v576 = vmul.f32 %v395, %v558
        %v577 = vmul.f32 %v418, %v573
        %v578 = vmul.f32 %v574, %v470
        %v579 = vmul.f32 %v575, %v493
        %v580 = vmul.f32 %v576, %v473
        %v581 = vmul.f32 %v577, %v496
        %v582 = vld [vmem:[#allocation10] sm:$0xff]
        %v583 = vld [vmem:[#allocation10 + $0x8] sm:$0xff]
        %v584 = vld [vmem:[%s298] sm:$0xff]
        %v585 = vld [vmem:[%s298 + $0x8] sm:$0xff]
        %v586 = vld [vmem:[%s298 + $0x10] sm:$0xff]
        %v587 = vld [vmem:[%s298 + $0x18] sm:$0xff]
        %v588 = vld [vmem:[%s298 + $0x20] sm:$0xff]
        %v589 = vld [vmem:[%s298 + $0x28] sm:$0xff]
        %v590 = vld [vmem:[%s298 + $0x30] sm:$0xff]
        %v591 = vld [vmem:[%s298 + $0x38] sm:$0xff]
        %v592 = vld [vmem:[%s298 + $0x40] sm:$0xff]
        %v593 = vld [vmem:[%s298 + $0x48] sm:$0xff]
        %v594 = vld [vmem:[%s298 + $0x50] sm:$0xff]
        %v595 = vld [vmem:[%s298 + $0x58] sm:$0xff]
        %v596 = vld [vmem:[%s298 + $0x60] sm:$0xff]
        %v597 = vld [vmem:[%s298 + $0x68] sm:$0xff]
        %v598 = vld [vmem:[%s298 + $0x70] sm:$0xff]
        %v599 = vld [vmem:[%s298 + $0x78] sm:$0xff]
        %v600 = vld [vmem:[%s298 + $0x80] sm:$0xff]
        %v601 = vld [vmem:[%s298 + $0x88] sm:$0xff]
        %v602 = vld [vmem:[%s298 + $0x90] sm:$0xff]
        %v603 = vld [vmem:[%s298 + $0x98] sm:$0xff]
        %v604 = vld [vmem:[%s298 + $0xa0] sm:$0xff]
        %v605 = vld [vmem:[%s298 + $0xa8] sm:$0xff]
        %v606 = vld [vmem:[%s298 + $0xb0] sm:$0xff]
        %v607 = vld [vmem:[%s298 + $0xb8] sm:$0xff]
        %v608 = vld [vmem:[%s298 + $0xc0] sm:$0xff]
        %v609 = vld [vmem:[%s298 + $0xc8] sm:$0xff]
        %v610 = vld [vmem:[%s298 + $0xd0] sm:$0xff]
        %v611 = vld [vmem:[%s298 + $0xd8] sm:$0xff]
        %v612 = vld [vmem:[%s298 + $0xe0] sm:$0xff]
        %v613 = vld [vmem:[%s298 + $0xe8] sm:$0xff]
        %v614 = vld [vmem:[%s298 + $0xf0] sm:$0xff]
        %v615 = vld [vmem:[%s298 + $0xf8] sm:$0xff]
        %616 = vmatpush.msra.mxu0 %v599
        %617 = vmatpush.msra.mxu0 %v598
        %618 = vmatpush.msra.mxu0 %v597
        %619 = vmatpush.msra.mxu0 %v596
        %620 = vmatpush.msra.mxu0 %v595
        %621 = vmatpush.msra.mxu0 %v594
        %622 = vmatpush.msra.mxu0 %v593
        %623 = vmatpush.msra.mxu0 %v592
        %624 = vmatpush.msra.mxu0 %v591
        %625 = vmatpush.msra.mxu0 %v590
        %626 = vmatpush.msra.mxu0 %v589
        %627 = vmatpush.msra.mxu0 %v588
        %628 = vmatpush.msra.mxu0 %v587
        %629 = vmatpush.msra.mxu0 %v586
        %630 = vmatpush.msra.mxu0 %v585
        %631 = vmatpush.msra.mxu0 %v584
        %632 = vmatmul.f32.gmra.mxu0 %v578
        %v633 = vpop.f32.mrf.mxu0
        %v634 = vadd.f32 0.0, %v633
        %635 = vmatmul.f32.gmra.mxu0 %v580
        %v636 = vpop.f32.mrf.mxu0
        %v637 = vadd.f32 0.0, %v636
        %638 = vdwg.mxu0
        %639 = vmatpush.msra.mxu0 %v615
        %640 = vmatpush.msra.mxu0 %v614
        %641 = vmatpush.msra.mxu0 %v613
        %642 = vmatpush.msra.mxu0 %v612
        %643 = vmatpush.msra.mxu0 %v611
        %644 = vmatpush.msra.mxu0 %v610
        %645 = vmatpush.msra.mxu0 %v609
        %646 = vmatpush.msra.mxu0 %v608
        %647 = vmatpush.msra.mxu0 %v607
        %648 = vmatpush.msra.mxu0 %v606
        %649 = vmatpush.msra.mxu0 %v605
        %650 = vmatpush.msra.mxu0 %v604
        %651 = vmatpush.msra.mxu0 %v603
        %652 = vmatpush.msra.mxu0 %v602
        %653 = vmatpush.msra.mxu0 %v601
        %654 = vmatpush.msra.mxu0 %v600
        %655 = vmatmul.f32.gmra.mxu0 %v579
        %v656 = vpop.f32.mrf.mxu0
        %v657 = vadd.f32 %v634, %v656
        %658 = vmatmul.f32.gmra.mxu0 %v581
        %v659 = vpop.f32.mrf.mxu0
        %v660 = vadd.f32 %v637, %v659
        %661 = vdwg.mxu0
        %v662 = vadd.f32 %v582, %v657
        %v663 = vadd.f32 %v583, %v660
        %664 = vst [vmem:[#allocation10] sm:$0xff] %v662
        %665 = vst [vmem:[#allocation10 + $0x8] sm:$0xff] %v663
        // Predicated region
        $region57: #{_feed_forward_impl.1} parent=35 // pred_check
          %p666 = pneg %p157
        $region58: #{_feed_forward_impl.1} parent=35 // pred_check_branch
          %668 = sbr.rel (%p666) target = $region60
        $region59: #{_feed_forward_impl.1} parent=35 // pred_region
          %s669 = smul.u32 2, %s27
          %671 = vsyncadd [#allocation4], 0
          %s672 = smul.addr %s669, 8
          %s673 = scalar_lea.hbm %s4, %s672
          %s674 = sshll.u32 [#allocation10], 4
          %s675 = int_to_ptr.vmem [resolvable:$true] %s674
          %s676 = sshll.u32 %s673, 4
          %s677 = int_to_ptr.hbm [resolvable:$true] %s676
          %682 = dma.vmem_to_hbm [thread:$0]  %s675, 256, %s677, [#allocation4], 128, 128, 8
        $region60: #{_feed_forward_impl.1} parent=35 // pred_fallthru
          _
        // Predicated region
        $region61: #{_feed_forward_impl.1} parent=35 // pred_check
          %p683 = pneg %p157
        $region62: #{_feed_forward_impl.1} parent=35 // pred_check_branch
          %685 = sbr.rel (%p683) target = $region64
        $region63: #{_feed_forward_impl.1} parent=35 // pred_region
          %687 = dma.done [#allocation4], 256
        $region64: #{_feed_forward_impl.1} parent=35 // pred_fallthru
          _
      $region36: #{_feed_forward_impl.1} parent=5 // pred_fallthru
        _
      %p688 = scmp.le.s32.totalorder 2, %s18
      // Predicated region
      $region65: #{_feed_forward_impl.1} parent=5 // pred_check
        %p689 = pneg %p688
      $region66: #{_feed_forward_impl.1} parent=5 // pred_check_branch
        %691 = sbr.rel (%p689) target = $region68
      $region67: #{_feed_forward_impl.1} parent=5 // pred_region
        %s692 = ssub.s32 %s18, 2
      $region68: #{_feed_forward_impl.1} parent=5 // pred_fallthru
        _
    $region6: #{_feed_forward_impl.1} parent=1 // loop_footer
      %s22 = sadd.s32 1, %s18
    $region7: #{_feed_forward_impl.1} parent=1 // loop_footer_branch
      %17 = sbr.rel target = $region3
    $region8: #{_feed_forward_impl.1} parent=1 // loop_exit
      _
    %693 = vsyncpa [#allocation3], 1
    %s694 = scalar_lea.sflag [#allocation3], 1
    %695 = vsyncpa %s694, 1
    %696 = vsyncpa [#allocation6], 1
    %s697 = scalar_lea.sflag [#allocation6], 1
    %698 = vsyncpa %s697, 1
    %699 = vsyncpa [#allocation9], 1
    %s700 = scalar_lea.sflag [#allocation9], 1
    %701 = vsyncpa %s700, 1
    %702 = vsyncpa [#allocation4], 1
    %s703 = scalar_lea.sflag [#allocation4], 1
    %704 = vsyncpa %s703, 1

</llo_original>
